<compile_context>
chip_gen: v7x
topology: tpu7x:2x2x1
jax: 0.10.0
libtpu: 0.0.40
codegen_flags: <defaults>
</compile_context>

<pallas_src>
import jax
import jax.numpy as jnp
from jax.experimental import pallas as pl
from jax.experimental.pallas import tpu as pltpu

EPS = 1e-8


def make_temporal_block(B, C_in, C_out, T, K, dilation, padding,
                        batches_per_step=None, vmem_limit_bytes=None):
    """Returns callable(x, params) computing TemporalBlock forward with a Pallas kernel.

    batches_per_step: batches processed per grid step.  Default = B (single grid step; best on
    single-TensorCore v5e/v6e).  On v7x (2 TCs) pass B // 2 so the "parallel" grid axis puts one
    step on each core.  At production sizes (C, T large) pick BPS so the double-buffered
    (C_in, BPS*T) input/output slabs plus (C_out, BPS*T) intermediates fit VMEM (v7x: 64 MiB),
    and set vmem_limit_bytes explicitly.
    """
    assert (T + 2 * padding - dilation * (K - 1) - 1) + 1 == T, \
        "padding/dilation must preserve T so the residual add is valid"
    if batches_per_step is None:
        batches_per_step = B
    assert B % batches_per_step == 0
    BPS = batches_per_step
    G = B // BPS
    L = BPS * T                         # lane width of the batched slab
    R = max(C_in, C_out)                # sublane height of the packed param slab
    P = C_in + C_out + 4 + K            # packed cols: w1 | wp | g1 b1 g2 b2 | dw[K]
    GL_BASE = C_in + C_out
    DW_BASE = GL_BASE + 4
    n_inv = 1.0 / float(C_out * T)
    tap_offsets = [k * dilation - padding for k in range(K)]   # static

    def kernel(alphas_ref, x_ref, pp_ref, o_ref):
        a1 = alphas_ref[0]
        a2 = alphas_ref[1]
        pp = pp_ref[...]                                   # (R, P) packed params (one DMA)
        w1 = pp[:C_out, 0:C_in]                            # (C_out, C_in)  conv1x1 weight
        wp = pp[:C_in, C_in:C_in + C_out]                  # (C_in, C_out)  pointwise weight
        g1 = pp[:C_out, GL_BASE + 0:GL_BASE + 1]
        b1 = pp[:C_out, GL_BASE + 1:GL_BASE + 2]
        g2 = pp[:C_out, GL_BASE + 2:GL_BASE + 3]
        b2 = pp[:C_out, GL_BASE + 3:GL_BASE + 4]

        x = x_ref[0]                                       # (C_in, L): BPS batches side by side

        # ---- 1x1 conv (C_in -> C_out): ONE batched MXU matmul over BPS*T columns ----
        y = jnp.dot(w1, x, preferred_element_type=jnp.float32)   # (C_out, L)

        # ---- PReLU (shared alpha) ----
        y = jnp.where(y >= 0.0, y, a1 * y)

        # ---- Global LayerNorm (per batch element): fused one-pass stats + rsqrt scale/shift ----
        def gln(u, gamma, beta):
            parts = []
            for b in range(BPS):                           # tiny static loop; slices vreg-aligned
                ub = u[:, b * T:(b + 1) * T] if BPS > 1 else u
                cat = jnp.concatenate([ub, ub * ub], axis=0)     # (2*C_out, T)
                lane = jnp.sum(cat, axis=1, keepdims=True)       # ONE lane-reduce pass
                mean = jnp.sum(lane[:C_out, :]) * n_inv
                var = jnp.sum(lane[C_out:, :]) * n_inv - mean * mean
                var = jnp.maximum(var, 0.0)                # guard cancellation -> NaN in rsqrt
                scale = gamma * jax.lax.rsqrt(var + EPS)   # (C_out, 1)
                parts.append(ub * scale + (beta - mean * scale))
            return parts[0] if BPS == 1 else jnp.concatenate(parts, axis=1)

        y = gln(y, g1, b1)

        # ---- depthwise conv1d (groups=C_out, stride 1): register-resident roll + masks ----
        # Masks use (lane index mod T): lanes whose tap would cross a batch boundary are exactly
        # the zero-padding lanes, so a circular roll across the whole slab is safe.
        t_per = jax.lax.broadcasted_iota(jnp.int32, (1, T), 1)
        t_idx = jnp.concatenate([t_per] * BPS, axis=1) if BPS > 1 else t_per   # (1, L)
        z = None
        for k in range(K):
            off = tap_offsets[k]
            if off <= -T or off >= T:
                continue                                   # tap lies entirely in the zero padding
            wk = pp[:C_out, DW_BASE + k:DW_BASE + k + 1]   # (C_out, 1) per-channel weight
            if off == 0:
                tap = y
            else:
                tap = pltpu.roll(y, shift=(-off) % L, axis=1)    # tap[t] = y[t + off] (circular)
                mask = (t_idx >= -off) if off < 0 else (t_idx < T - off)
                tap = jnp.where(mask, tap, 0.0)            # zero out-of-range (padding)
            term = wk * tap                                # FMA on VPU
            z = term if z is None else z + term
        if z is None:
            z = jnp.zeros_like(y)

        # ---- PReLU + Global LayerNorm ----
        z = jnp.where(z >= 0.0, z, a2 * z)
        z = gln(z, g2, b2)

        # ---- pointwise 1x1 conv (C_out -> C_in) + residual: ONE batched MXU matmul ----
        o_ref[0] = jnp.dot(wp, z, preferred_element_type=jnp.float32) + x

    grid_spec = pltpu.PrefetchScalarGridSpec(
        num_scalar_prefetch=0,
        grid=(G,),
        in_specs=[
            pl.BlockSpec(memory_space=pltpu.MemorySpace.SMEM),   # alphas (2,)
            pl.BlockSpec((1, C_in, L), lambda g: (g, 0, 0)),     # x slab
            pl.BlockSpec((R, P), lambda g: (0, 0)),              # packed weights + gLN params + dw
        ],
        out_specs=pl.BlockSpec((1, C_in, L), lambda g: (g, 0, 0)),
    )

    call = pl.pallas_call(
        kernel,
        out_shape=jax.ShapeDtypeStruct((G, C_in, L), jnp.float32),
        grid_spec=grid_spec,
        compiler_params=pltpu.CompilerParams(
            dimension_semantics=("parallel",),
            vmem_limit_bytes=vmem_limit_bytes,
        ),
    )

    def forward(x, params):
        f32 = jnp.float32

        def rows(a):
            a = a.astype(f32)
            return jnp.pad(a, ((0, R - a.shape[0]), (0, 0))) if a.shape[0] < R else a

        pp = jnp.concatenate(
            [rows(params["w1"]), rows(params["wp"]),
             rows(params["gamma1"]), rows(params["beta1"]),
             rows(params["gamma2"]), rows(params["beta2"]),
             rows(params["dw"])], axis=1)

        # (B, C_in, T) -> (G, C_in, BPS*T): cheap layout plumbing so each grid step gets a
        # lane-dense slab and the two 1x1 convs become a single batched matmul each.
        x_slab = x.astype(f32).reshape(G, BPS, C_in, T).transpose(0, 2, 1, 3).reshape(G, C_in, L)
        o_slab = call(params["alphas"].astype(f32), x_slab, pp)
        return o_slab.reshape(G, C_in, BPS, T).transpose(0, 2, 1, 3).reshape(B, C_in, T)

    return forward


def reference_forward(x, params, K, dilation, padding):
    """Pure-JAX reference matching the PyTorch module semantics."""
    a1, a2 = params["alphas"][0], params["alphas"][1]
    y = jnp.einsum("oc,bct->bot", params["w1"], x)
    y = jnp.where(y >= 0.0, y, a1 * y)
    mean = y.mean(axis=(1, 2), keepdims=True)
    var = ((y - mean) ** 2).mean(axis=(1, 2), keepdims=True)
    y = params["gamma1"][None] * (y - mean) / jnp.sqrt(var + EPS) + params["beta1"][None]

    T = x.shape[-1]
    yp = jnp.pad(y, ((0, 0), (0, 0), (padding, padding)))
    z = jnp.zeros_like(y)
    for k in range(K):
        off = k * dilation
        z = z + params["dw"][None, :, k:k + 1] * yp[:, :, off:off + T]

    z = jnp.where(z >= 0.0, z, a2 * z)
    mean2 = z.mean(axis=(1, 2), keepdims=True)
    var2 = ((z - mean2) ** 2).mean(axis=(1, 2), keepdims=True)
    z = params["gamma2"][None] * (z - mean2) / jnp.sqrt(var2 + EPS) + params["beta2"][None]

    out = jnp.einsum("io,bot->bit", params["wp"], z)
    return out + x


if __name__ == "__main__":
    # Small TCN-style config: TemporalBlock(in_channels=8, out_channels=16, kernel_size=3,
    #                                       stride=1, padding=2, dilation=2)
    B, C_in, C_out, T = 2, 8, 16, 128
    K, stride, padding, dilation = 3, 1, 2, 2

    key = jax.random.PRNGKey(0)
    k1, k2, k3, k4 = jax.random.split(key, 4)

    params = {
        "w1": 0.1 * jax.random.normal(k1, (C_out, C_in), jnp.float32),   # conv1x1 weight
        "dw": 0.1 * jax.random.normal(k2, (C_out, K), jnp.float32),      # depthwise weight
        "wp": 0.1 * jax.random.normal(k3, (C_in, C_out), jnp.float32),   # pointwise weight
        "gamma1": jnp.ones((C_out, 1), jnp.float32),                     # gLN init: gamma=1
        "beta1": jnp.zeros((C_out, 1), jnp.float32),                     # gLN init: beta=0
        "gamma2": jnp.ones((C_out, 1), jnp.float32),
        "beta2": jnp.zeros((C_out, 1), jnp.float32),
        "alphas": jnp.array([0.25, 0.25], jnp.float32),                  # PReLU default init
    }

    x = jax.random.normal(k4, (B, C_in, T), jnp.float32)

    # Default folds the whole batch into one grid step (best on single-TC v5e/v6e).
    # On v7x, use batches_per_step=B // 2 so each TensorCore gets one grid step.
    fwd = make_temporal_block(B, C_in, C_out, T, K, dilation, padding)
    out = jax.block_until_ready(fwd(x, params))

    ref = jax.block_until_ready(reference_forward(x, params, K, dilation, padding))
    assert out.shape == (B, C_in, T)
    assert jnp.allclose(out, ref, atol=1e-4, rtol=1e-4), float(jnp.max(jnp.abs(out - ref)))

    print("KERNEL_OK")
</pallas_src>

<mosaic_0001>
module attributes {stable_mosaic.version = 11 : i64} {
  func.func @kernel(%arg0: i32, %arg1: memref<2xf32, #tpu.memory_space<smem>>, %arg2: memref<1x8x256xf32, #tpu.memory_space<vmem>>, %arg3: memref<16x31xf32, #tpu.memory_space<vmem>>, %arg4: memref<1x8x256xf32, #tpu.memory_space<vmem>>) attributes {dimension_semantics = [#tpu.dimension_semantics<parallel>], iteration_bounds = array<i64: 1>, scalar_prefetch = 0 : i64, scratch_operands = 0 : i64, tpu.core_type = #tpu.core_type<tc>, window_params = [{transform_indices = @transform_0, window_bounds = array<i64: 2>}, {transform_indices = @transform_1, window_bounds = array<i64: 1, 8, 256>}, {pipeline_mode = #tpu.pipeline_mode<synchronous>, transform_indices = @transform_2, window_bounds = array<i64: 16, 31>}, {transform_indices = @transform_3, window_bounds = array<i64: 1, 8, 256>}]} {
    %c0 = arith.constant 0 : index
    %0 = memref.load %arg1[%c0] : memref<2xf32, #tpu.memory_space<smem>>
    %c1 = arith.constant 1 : index
    %1 = memref.load %arg1[%c1] : memref<2xf32, #tpu.memory_space<smem>>
    %c0_0 = arith.constant 0 : index
    %c0_1 = arith.constant 0 : index
    %2 = vector.load %arg3[%c0_0, %c0_1] : memref<16x31xf32, #tpu.memory_space<vmem>>, vector<16x31xf32>
    %3 = vector.extract_strided_slice %2 {offsets = [0, 0], sizes = [16, 8], strides = [1, 1]} : vector<16x31xf32> to vector<16x8xf32>
    %4 = vector.extract_strided_slice %2 {offsets = [0, 8], sizes = [8, 16], strides = [1, 1]} : vector<16x31xf32> to vector<8x16xf32>
    %5 = vector.extract_strided_slice %2 {offsets = [0, 24], sizes = [16, 1], strides = [1, 1]} : vector<16x31xf32> to vector<16x1xf32>
    %6 = vector.extract_strided_slice %2 {offsets = [0, 25], sizes = [16, 1], strides = [1, 1]} : vector<16x31xf32> to vector<16x1xf32>
    %7 = vector.extract_strided_slice %2 {offsets = [0, 26], sizes = [16, 1], strides = [1, 1]} : vector<16x31xf32> to vector<16x1xf32>
    %8 = vector.extract_strided_slice %2 {offsets = [0, 27], sizes = [16, 1], strides = [1, 1]} : vector<16x31xf32> to vector<16x1xf32>
    %c0_2 = arith.constant 0 : index
    %c0_3 = arith.constant 0 : index
    %c0_4 = arith.constant 0 : index
    %9 = vector.load %arg2[%c0_2, %c0_3, %c0_4] : memref<1x8x256xf32, #tpu.memory_space<vmem>>, vector<1x8x256xf32>
    %10 = vector.shape_cast %9 : vector<1x8x256xf32> to vector<8x256xf32>
    %cst = arith.constant dense<0.000000e+00> : vector<16x256xf32>
    %11 = tpu.matmul %3, %10, %cst {dimension_numbers = #tpu.dot_dimension_numbers<[1], [0], [0], [1], [0, 0, 1, 1], [], []>} : vector<16x8xf32>, vector<8x256xf32>, vector<16x256xf32> -> vector<16x256xf32>
    %cst_5 = arith.constant 0.000000e+00 : f32
    %12 = vector.broadcast %cst_5 : f32 to vector<16x256xf32>
    %13 = arith.cmpf oge, %11, %12 : vector<16x256xf32>
    %14 = vector.broadcast %0 : f32 to vector<16x256xf32>
    %15 = arith.mulf %14, %11 : vector<16x256xf32>
    %16 = arith.select %13, %11, %15 : vector<16x256xi1>, vector<16x256xf32>
    %17 = vector.extract_strided_slice %16 {offsets = [0, 0], sizes = [16, 128], strides = [1, 1]} : vector<16x256xf32> to vector<16x128xf32>
    %18 = arith.mulf %17, %17 : vector<16x128xf32>
    %19 = tpu.concatenate %17, %18 in 0 : vector<16x128xf32>, vector<16x128xf32> -> vector<32x128xf32>
    %cst_6 = arith.constant dense<0.000000e+00> : vector<32xf32>
    %20 = vector.multi_reduction <add>, %19, %cst_6 [1] : vector<32x128xf32> to vector<32xf32>
    %21 = vector.shape_cast %20 : vector<32xf32> to vector<32x1xf32>
    %22 = vector.extract_strided_slice %21 {offsets = [0, 0], sizes = [16, 1], strides = [1, 1]} : vector<32x1xf32> to vector<16x1xf32>
    %23 = vector.shape_cast %22 : vector<16x1xf32> to vector<1x16x1xf32>
    %cst_7 = arith.constant dense<0.000000e+00> : vector<1xf32>
    %24 = vector.multi_reduction <add>, %23, %cst_7 [1, 2] : vector<1x16x1xf32> to vector<1xf32>
    %25 = vector.shape_cast %24 : vector<1xf32> to vector<1x1x1xf32>
    %26 = vector.extract %25[0, 0, 0] : f32 from vector<1x1x1xf32>
    %cst_8 = arith.constant 4.8828125E-4 : f32
    %27 = arith.mulf %26, %cst_8 : f32
    %28 = vector.extract_strided_slice %21 {offsets = [16, 0], sizes = [16, 1], strides = [1, 1]} : vector<32x1xf32> to vector<16x1xf32>
    %29 = vector.shape_cast %28 : vector<16x1xf32> to vector<1x16x1xf32>
    %cst_9 = arith.constant dense<0.000000e+00> : vector<1xf32>
    %30 = vector.multi_reduction <add>, %29, %cst_9 [1, 2] : vector<1x16x1xf32> to vector<1xf32>
    %31 = vector.shape_cast %30 : vector<1xf32> to vector<1x1x1xf32>
    %32 = vector.extract %31[0, 0, 0] : f32 from vector<1x1x1xf32>
    %cst_10 = arith.constant 4.8828125E-4 : f32
    %33 = arith.mulf %32, %cst_10 : f32
    %34 = arith.mulf %27, %27 : f32
    %35 = arith.subf %33, %34 : f32
    %cst_11 = arith.constant 0.000000e+00 : f32
    %36 = arith.maximumf %35, %cst_11 : f32
    %cst_12 = arith.constant 9.99999993E-9 : f32
    %37 = arith.addf %36, %cst_12 : f32
    %38 = math.rsqrt %37 : f32
    %39 = vector.broadcast %38 : f32 to vector<16x1xf32>
    %40 = arith.mulf %5, %39 : vector<16x1xf32>
    %41 = vector.broadcast %40 : vector<16x1xf32> to vector<16x128xf32>
    %42 = arith.mulf %17, %41 : vector<16x128xf32>
    %43 = vector.broadcast %27 : f32 to vector<16x1xf32>
    %44 = arith.mulf %43, %40 : vector<16x1xf32>
    %45 = arith.subf %6, %44 : vector<16x1xf32>
    %46 = vector.broadcast %45 : vector<16x1xf32> to vector<16x128xf32>
    %47 = arith.addf %42, %46 : vector<16x128xf32>
    %48 = vector.extract_strided_slice %16 {offsets = [0, 128], sizes = [16, 128], strides = [1, 1]} : vector<16x256xf32> to vector<16x128xf32>
    %49 = arith.mulf %48, %48 : vector<16x128xf32>
    %50 = tpu.concatenate %48, %49 in 0 : vector<16x128xf32>, vector<16x128xf32> -> vector<32x128xf32>
    %cst_13 = arith.constant dense<0.000000e+00> : vector<32xf32>
    %51 = vector.multi_reduction <add>, %50, %cst_13 [1] : vector<32x128xf32> to vector<32xf32>
    %52 = vector.shape_cast %51 : vector<32xf32> to vector<32x1xf32>
    %53 = vector.extract_strided_slice %52 {offsets = [0, 0], sizes = [16, 1], strides = [1, 1]} : vector<32x1xf32> to vector<16x1xf32>
    %54 = vector.shape_cast %53 : vector<16x1xf32> to vector<1x16x1xf32>
    %cst_14 = arith.constant dense<0.000000e+00> : vector<1xf32>
    %55 = vector.multi_reduction <add>, %54, %cst_14 [1, 2] : vector<1x16x1xf32> to vector<1xf32>
    %56 = vector.shape_cast %55 : vector<1xf32> to vector<1x1x1xf32>
    %57 = vector.extract %56[0, 0, 0] : f32 from vector<1x1x1xf32>
    %cst_15 = arith.constant 4.8828125E-4 : f32
    %58 = arith.mulf %57, %cst_15 : f32
    %59 = vector.extract_strided_slice %52 {offsets = [16, 0], sizes = [16, 1], strides = [1, 1]} : vector<32x1xf32> to vector<16x1xf32>
    %60 = vector.shape_cast %59 : vector<16x1xf32> to vector<1x16x1xf32>
    %cst_16 = arith.constant dense<0.000000e+00> : vector<1xf32>
    %61 = vector.multi_reduction <add>, %60, %cst_16 [1, 2] : vector<1x16x1xf32> to vector<1xf32>
    %62 = vector.shape_cast %61 : vector<1xf32> to vector<1x1x1xf32>
    %63 = vector.extract %62[0, 0, 0] : f32 from vector<1x1x1xf32>
    %cst_17 = arith.constant 4.8828125E-4 : f32
    %64 = arith.mulf %63, %cst_17 : f32
    %65 = arith.mulf %58, %58 : f32
    %66 = arith.subf %64, %65 : f32
    %cst_18 = arith.constant 0.000000e+00 : f32
    %67 = arith.maximumf %66, %cst_18 : f32
    %cst_19 = arith.constant 9.99999993E-9 : f32
    %68 = arith.addf %67, %cst_19 : f32
    %69 = math.rsqrt %68 : f32
    %70 = vector.broadcast %69 : f32 to vector<16x1xf32>
    %71 = arith.mulf %5, %70 : vector<16x1xf32>
    %72 = vector.broadcast %71 : vector<16x1xf32> to vector<16x128xf32>
    %73 = arith.mulf %48, %72 : vector<16x128xf32>
    %74 = vector.broadcast %58 : f32 to vector<16x1xf32>
    %75 = arith.mulf %74, %71 : vector<16x1xf32>
    %76 = arith.subf %6, %75 : vector<16x1xf32>
    %77 = vector.broadcast %76 : vector<16x1xf32> to vector<16x128xf32>
    %78 = arith.addf %73, %77 : vector<16x128xf32>
    %79 = tpu.concatenate %47, %78 in 1 : vector<16x128xf32>, vector<16x128xf32> -> vector<16x256xf32>
    %80 = tpu.iota {dimensions = array<i32: 1>} : vector<1x128xi32>
    %81 = tpu.concatenate %80, %80 in 1 : vector<1x128xi32>, vector<1x128xi32> -> vector<1x256xi32>
    %82 = vector.extract_strided_slice %2 {offsets = [0, 28], sizes = [16, 1], strides = [1, 1]} : vector<16x31xf32> to vector<16x1xf32>
    %c2_i32 = arith.constant 2 : i32
    %83 = tpu.dynamic_rotate %79 by %c2_i32 dim 1 : vector<16x256xf32>, i32 -> vector<16x256xf32>
    %c2_i32_20 = arith.constant 2 : i32
    %84 = vector.broadcast %c2_i32_20 : i32 to vector<1x256xi32>
    %85 = arith.cmpi sge, %81, %84 : vector<1x256xi32>
    %cst_21 = arith.constant 0.000000e+00 : f32
    %86 = vector.shape_cast %85 : vector<1x256xi1> to vector<1x256xi1>
    %87 = vector.broadcast %86 : vector<1x256xi1> to vector<16x256xi1>
    %88 = vector.broadcast %cst_21 : f32 to vector<16x256xf32>
    %89 = arith.select %87, %83, %88 : vector<16x256xi1>, vector<16x256xf32>
    %90 = vector.broadcast %82 : vector<16x1xf32> to vector<16x256xf32>
    %91 = arith.mulf %90, %89 : vector<16x256xf32>
    %92 = vector.extract_strided_slice %2 {offsets = [0, 29], sizes = [16, 1], strides = [1, 1]} : vector<16x31xf32> to vector<16x1xf32>
    %93 = vector.broadcast %92 : vector<16x1xf32> to vector<16x256xf32>
    %94 = arith.mulf %93, %79 : vector<16x256xf32>
    %95 = arith.addf %91, %94 : vector<16x256xf32>
    %96 = vector.extract_strided_slice %2 {offsets = [0, 30], sizes = [16, 1], strides = [1, 1]} : vector<16x31xf32> to vector<16x1xf32>
    %c254_i32 = arith.constant 254 : i32
    %97 = tpu.dynamic_rotate %79 by %c254_i32 dim 1 : vector<16x256xf32>, i32 -> vector<16x256xf32>
    %c126_i32 = arith.constant 126 : i32
    %98 = vector.broadcast %c126_i32 : i32 to vector<1x256xi32>
    %99 = arith.cmpi slt, %81, %98 : vector<1x256xi32>
    %cst_22 = arith.constant 0.000000e+00 : f32
    %100 = vector.shape_cast %99 : vector<1x256xi1> to vector<1x256xi1>
    %101 = vector.broadcast %100 : vector<1x256xi1> to vector<16x256xi1>
    %102 = vector.broadcast %cst_22 : f32 to vector<16x256xf32>
    %103 = arith.select %101, %97, %102 : vector<16x256xi1>, vector<16x256xf32>
    %104 = vector.broadcast %96 : vector<16x1xf32> to vector<16x256xf32>
    %105 = arith.mulf %104, %103 : vector<16x256xf32>
    %106 = arith.addf %95, %105 : vector<16x256xf32>
    %cst_23 = arith.constant 0.000000e+00 : f32
    %107 = vector.broadcast %cst_23 : f32 to vector<16x256xf32>
    %108 = arith.cmpf oge, %106, %107 : vector<16x256xf32>
    %109 = vector.broadcast %1 : f32 to vector<16x256xf32>
    %110 = arith.mulf %109, %106 : vector<16x256xf32>
    %111 = arith.select %108, %106, %110 : vector<16x256xi1>, vector<16x256xf32>
    %112 = vector.extract_strided_slice %111 {offsets = [0, 0], sizes = [16, 128], strides = [1, 1]} : vector<16x256xf32> to vector<16x128xf32>
    %113 = arith.mulf %112, %112 : vector<16x128xf32>
    %114 = tpu.concatenate %112, %113 in 0 : vector<16x128xf32>, vector<16x128xf32> -> vector<32x128xf32>
    %cst_24 = arith.constant dense<0.000000e+00> : vector<32xf32>
    %115 = vector.multi_reduction <add>, %114, %cst_24 [1] : vector<32x128xf32> to vector<32xf32>
    %116 = vector.shape_cast %115 : vector<32xf32> to vector<32x1xf32>
    %117 = vector.extract_strided_slice %116 {offsets = [0, 0], sizes = [16, 1], strides = [1, 1]} : vector<32x1xf32> to vector<16x1xf32>
    %118 = vector.shape_cast %117 : vector<16x1xf32> to vector<1x16x1xf32>
    %cst_25 = arith.constant dense<0.000000e+00> : vector<1xf32>
    %119 = vector.multi_reduction <add>, %118, %cst_25 [1, 2] : vector<1x16x1xf32> to vector<1xf32>
    %120 = vector.shape_cast %119 : vector<1xf32> to vector<1x1x1xf32>
    %121 = vector.extract %120[0, 0, 0] : f32 from vector<1x1x1xf32>
    %cst_26 = arith.constant 4.8828125E-4 : f32
    %122 = arith.mulf %121, %cst_26 : f32
    %123 = vector.extract_strided_slice %116 {offsets = [16, 0], sizes = [16, 1], strides = [1, 1]} : vector<32x1xf32> to vector<16x1xf32>
    %124 = vector.shape_cast %123 : vector<16x1xf32> to vector<1x16x1xf32>
    %cst_27 = arith.constant dense<0.000000e+00> : vector<1xf32>
    %125 = vector.multi_reduction <add>, %124, %cst_27 [1, 2] : vector<1x16x1xf32> to vector<1xf32>
    %126 = vector.shape_cast %125 : vector<1xf32> to vector<1x1x1xf32>
    %127 = vector.extract %126[0, 0, 0] : f32 from vector<1x1x1xf32>
    %cst_28 = arith.constant 4.8828125E-4 : f32
    %128 = arith.mulf %127, %cst_28 : f32
    %129 = arith.mulf %122, %122 : f32
    %130 = arith.subf %128, %129 : f32
    %cst_29 = arith.constant 0.000000e+00 : f32
    %131 = arith.maximumf %130, %cst_29 : f32
    %cst_30 = arith.constant 9.99999993E-9 : f32
    %132 = arith.addf %131, %cst_30 : f32
    %133 = math.rsqrt %132 : f32
    %134 = vector.broadcast %133 : f32 to vector<16x1xf32>
    %135 = arith.mulf %7, %134 : vector<16x1xf32>
    %136 = vector.broadcast %135 : vector<16x1xf32> to vector<16x128xf32>
    %137 = arith.mulf %112, %136 : vector<16x128xf32>
    %138 = vector.broadcast %122 : f32 to vector<16x1xf32>
    %139 = arith.mulf %138, %135 : vector<16x1xf32>
    %140 = arith.subf %8, %139 : vector<16x1xf32>
    %141 = vector.broadcast %140 : vector<16x1xf32> to vector<16x128xf32>
    %142 = arith.addf %137, %141 : vector<16x128xf32>
    %143 = vector.extract_strided_slice %111 {offsets = [0, 128], sizes = [16, 128], strides = [1, 1]} : vector<16x256xf32> to vector<16x128xf32>
    %144 = arith.mulf %143, %143 : vector<16x128xf32>
    %145 = tpu.concatenate %143, %144 in 0 : vector<16x128xf32>, vector<16x128xf32> -> vector<32x128xf32>
    %cst_31 = arith.constant dense<0.000000e+00> : vector<32xf32>
    %146 = vector.multi_reduction <add>, %145, %cst_31 [1] : vector<32x128xf32> to vector<32xf32>
    %147 = vector.shape_cast %146 : vector<32xf32> to vector<32x1xf32>
    %148 = vector.extract_strided_slice %147 {offsets = [0, 0], sizes = [16, 1], strides = [1, 1]} : vector<32x1xf32> to vector<16x1xf32>
    %149 = vector.shape_cast %148 : vector<16x1xf32> to vector<1x16x1xf32>
    %cst_32 = arith.constant dense<0.000000e+00> : vector<1xf32>
    %150 = vector.multi_reduction <add>, %149, %cst_32 [1, 2] : vector<1x16x1xf32> to vector<1xf32>
    %151 = vector.shape_cast %150 : vector<1xf32> to vector<1x1x1xf32>
    %152 = vector.extract %151[0, 0, 0] : f32 from vector<1x1x1xf32>
    %cst_33 = arith.constant 4.8828125E-4 : f32
    %153 = arith.mulf %152, %cst_33 : f32
    %154 = vector.extract_strided_slice %147 {offsets = [16, 0], sizes = [16, 1], strides = [1, 1]} : vector<32x1xf32> to vector<16x1xf32>
    %155 = vector.shape_cast %154 : vector<16x1xf32> to vector<1x16x1xf32>
    %cst_34 = arith.constant dense<0.000000e+00> : vector<1xf32>
    %156 = vector.multi_reduction <add>, %155, %cst_34 [1, 2] : vector<1x16x1xf32> to vector<1xf32>
    %157 = vector.shape_cast %156 : vector<1xf32> to vector<1x1x1xf32>
    %158 = vector.extract %157[0, 0, 0] : f32 from vector<1x1x1xf32>
    %cst_35 = arith.constant 4.8828125E-4 : f32
    %159 = arith.mulf %158, %cst_35 : f32
    %160 = arith.mulf %153, %153 : f32
    %161 = arith.subf %159, %160 : f32
    %cst_36 = arith.constant 0.000000e+00 : f32
    %162 = arith.maximumf %161, %cst_36 : f32
    %cst_37 = arith.constant 9.99999993E-9 : f32
    %163 = arith.addf %162, %cst_37 : f32
    %164 = math.rsqrt %163 : f32
    %165 = vector.broadcast %164 : f32 to vector<16x1xf32>
    %166 = arith.mulf %7, %165 : vector<16x1xf32>
    %167 = vector.broadcast %166 : vector<16x1xf32> to vector<16x128xf32>
    %168 = arith.mulf %143, %167 : vector<16x128xf32>
    %169 = vector.broadcast %153 : f32 to vector<16x1xf32>
    %170 = arith.mulf %169, %166 : vector<16x1xf32>
    %171 = arith.subf %8, %170 : vector<16x1xf32>
    %172 = vector.broadcast %171 : vector<16x1xf32> to vector<16x128xf32>
    %173 = arith.addf %168, %172 : vector<16x128xf32>
    %174 = tpu.concatenate %142, %173 in 1 : vector<16x128xf32>, vector<16x128xf32> -> vector<16x256xf32>
    %cst_38 = arith.constant dense<0.000000e+00> : vector<8x256xf32>
    %175 = tpu.matmul %4, %174, %cst_38 {dimension_numbers = #tpu.dot_dimension_numbers<[1], [0], [0], [1], [0, 0, 1, 1], [], []>} : vector<8x16xf32>, vector<16x256xf32>, vector<8x256xf32> -> vector<8x256xf32>
    %176 = arith.addf %175, %10 : vector<8x256xf32>
    %c0_39 = arith.constant 0 : index
    %c0_40 = arith.constant 0 : index
    %c0_41 = arith.constant 0 : index
    %177 = vector.load %arg4[%c0_39, %c0_40, %c0_41] : memref<1x8x256xf32, #tpu.memory_space<vmem>>, vector<1x8x256xf32>
    %178 = vector.shape_cast %177 : vector<1x8x256xf32> to vector<8x256xf32>
    %179 = vector.shape_cast %176 : vector<8x256xf32> to vector<1x8x256xf32>
    tpu.vector_store %arg4[%c0_39, %c0_40, %c0_41], %179 {strides = array<i32>} : memref<1x8x256xf32, #tpu.memory_space<vmem>>, vector<1x8x256xf32>,
    return
  }
  func.func @transform_0(%arg0: i32) -> i32 {
    %c0_i32 = arith.constant 0 : i32
    %c0_i32_0 = arith.constant 0 : i32
    return %c0_i32 : i32
  }
  func.func @transform_1(%arg0: i32) -> (i32, i32, i32) {
    %c0_i32 = arith.constant 0 : i32
    %c0_i32_0 = arith.constant 0 : i32
    %c0_i32_1 = arith.constant 0 : i32
    return %arg0, %c0_i32, %c0_i32_0 : i32, i32, i32
  }
  func.func @transform_2(%arg0: i32) -> (i32, i32) {
    %c0_i32 = arith.constant 0 : i32
    %c0_i32_0 = arith.constant 0 : i32
    %c0_i32_1 = arith.constant 0 : i32
    return %c0_i32, %c0_i32_0 : i32, i32
  }
  func.func @transform_3(%arg0: i32) -> (i32, i32, i32) {
    %c0_i32 = arith.constant 0 : i32
    %c0_i32_0 = arith.constant 0 : i32
    %c0_i32_1 = arith.constant 0 : i32
    return %arg0, %c0_i32, %c0_i32_0 : i32, i32, i32
  }
}

</mosaic_0001>

<llo_original>
// kernel: tpu_custom_call.1
$region0: #{tpu_custom_call.1}
  #allocation0 [shape = 'u32[]', space=smem, size = 0x4, offset = 0x4, fixed_abs, tag = 'smem constant byte address 0x4 - core index']
  #allocation1 [shape = 'u32[144,128]{1,0:T(1,128)}', space=vmem, size = 0x12000, scoped, tag = 'internal scratch']
  %s0 = inlined_call_operand.hbm [shape: f32[2], index: 0, kind: input, shape index: {}]
  %s1 = inlined_call_operand.hbm [shape: f32[1,8,256], index: 1, kind: input, shape index: {}]
  %s2 = inlined_call_operand.hbm [shape: f32[16,31], index: 2, kind: input, shape index: {}]
  %s3 = inlined_call_operand.hbm [shape: f32[1,8,256], index: 3, kind: output, shape index: {}]
  %s4 = sld [smem:[#allocation0]]
  $region34: #{tpu_custom_call.1} parent=0
    _
  %s6 = ssub.s32 1, %s4
  %s7 = scalar_select 0, %s6, %s4
  $region1: #{tpu_custom_call.1} parent=0
    #allocation2 [shape = 'u8[512]{0}', space=smem, size = 0x200, scoped, tag = 'input window, operand 0, single buffered']
    #allocation3 [shape = 's32[1]{0}', space=sflag, size = 0x4, scoped, tag = 'scoped memory for tpu_custom_call.1']
    #allocation4 [shape = 's32[1]{0}', space=sflag, size = 0x4, scoped, tag = 'scoped memory for tpu_custom_call.1']
    #allocation5 [shape = 's32[1]{0}', space=sflag, size = 0x4, scoped, tag = 'scoped memory for tpu_custom_call.1']
    #allocation6 [shape = 'u8[8192]{0}', space=vmem, size = 0x2000, scoped, tag = 'input window, operand 1, single buffered']
    #allocation7 [shape = 'u8[8192]{0}', space=vmem, size = 0x2000, scoped, tag = 'input window, operand 2, single buffered']
    #allocation8 [shape = 's32[1]{0}', space=sflag, size = 0x4, scoped, tag = 'scoped memory for tpu_custom_call.1']
    #allocation9 [shape = 'u8[8192]{0}', space=vmem, size = 0x2000, scoped, tag = 'output window, operand 0, single buffered']
    %8 = vsyncpa [#allocation5], 0
    %9 = vsyncpa [#allocation3], 0
    %10 = vsyncpa [#allocation8], 0
    %11 = vsyncpa [#allocation4], 0
    // Predicated region
    $region2: #{tpu_custom_call.1} parent=1 // pred_check
      _
    $region3: #{tpu_custom_call.1} parent=1 // pred_check_branch
      %13 = sbr.rel (0) target = $region5
    $region4: #{tpu_custom_call.1} parent=1 // pred_region
      %s15 = ssub.s32 16, 16
      %16 = vsyncadd [#allocation5], %s15
      %19 = dma.hbm_to_smem %s0, 16, [#allocation2], [#allocation5]
    $region5: #{tpu_custom_call.1} parent=1 // pred_fallthru
      _
    // Predicated region
    $region6: #{tpu_custom_call.1} parent=1 // pred_check
      _
    $region7: #{tpu_custom_call.1} parent=1 // pred_check_branch
      %21 = sbr.rel (0) target = $region9
    $region8: #{tpu_custom_call.1} parent=1 // pred_region
      %s23 = ssub.s32 256, 256
      %24 = vsyncadd [#allocation3], %s23
      %s26 = sshll.u32 [#allocation6], 4
      %s27 = int_to_ptr.vmem [resolvable:$true] %s26
      %29 = dma.hbm_to_vmem [thread:$0]  %s1, 256, %s27, [#allocation3]
    $region9: #{tpu_custom_call.1} parent=1 // pred_fallthru
      _
    // Predicated region
    $region10: #{tpu_custom_call.1} parent=1 // pred_check
      _
    $region11: #{tpu_custom_call.1} parent=1 // pred_check_branch
      %31 = sbr.rel (0) target = $region13
    $region12: #{tpu_custom_call.1} parent=1 // pred_region
      %s33 = ssub.s32 256, 256
      %34 = vsyncadd [#allocation8], %s33
      %s35 = sshll.u32 [#allocation7], 4
      %s36 = int_to_ptr.vmem [resolvable:$true] %s35
      %41 = dma.hbm_to_vmem [thread:$0]  %s2, 256, %s36, [#allocation8], 128, 128, 8
    $region13: #{tpu_custom_call.1} parent=1 // pred_fallthru
      _
    // Predicated region
    $region14: #{tpu_custom_call.1} parent=1 // pred_check
      _
    $region15: #{tpu_custom_call.1} parent=1 // pred_check_branch
      %43 = sbr.rel (0) target = $region17
    $region16: #{tpu_custom_call.1} parent=1 // pred_region
      %44 = dma.done [#allocation5], 16
    $region17: #{tpu_custom_call.1} parent=1 // pred_fallthru
      _
    // Predicated region
    $region18: #{tpu_custom_call.1} parent=1 // pred_check
      _
    $region19: #{tpu_custom_call.1} parent=1 // pred_check_branch
      %46 = sbr.rel (0) target = $region21
    $region20: #{tpu_custom_call.1} parent=1 // pred_region
      %47 = dma.done [#allocation3], 256
    $region21: #{tpu_custom_call.1} parent=1 // pred_fallthru
      _
    // Predicated region
    $region22: #{tpu_custom_call.1} parent=1 // pred_check
      _
    $region23: #{tpu_custom_call.1} parent=1 // pred_check_branch
      %49 = sbr.rel (0) target = $region25
    $region24: #{tpu_custom_call.1} parent=1 // pred_region
      %50 = dma.done [#allocation8], 256
    $region25: #{tpu_custom_call.1} parent=1 // pred_fallthru
      _
    %51 = sfence
    %s52 = sld [smem:[#allocation2]]
    %s53 = sld [smem:[#allocation2 + $0x1]]
    %v54 = vld [vmem:[#allocation7] sm:$0xff]
    %v55 = vld [vmem:[#allocation7 + $0x8] sm:$0xff]
    %v56 = vld [vmem:[#allocation6] sm:$0xff]
    %v57 = vld [vmem:[#allocation6 + $0x8] sm:$0xff]
    %vm58 = vcmask 64512
    %v60 = vsel %vm58, %v54, 0
    %v63 = vsel %vm58, %v55, 0
    %65 = vmatprep.subr.mxu0 %v57
    %66 = vmatpush1.msra.mxu0 %v56
    %67 = vmatprep.subr.mxu0 0.0
    %68 = vmatpush1.msra.mxu0 0.0
    %69 = vmatprep.subr.mxu0 0.0
    %70 = vmatpush1.msra.mxu0 0.0
    %71 = vmatprep.subr.mxu0 0.0
    %72 = vmatpush1.msra.mxu0 0.0
    %73 = vmatprep.subr.mxu0 0.0
    %74 = vmatpush1.msra.mxu0 0.0
    %75 = vmatprep.subr.mxu0 0.0
    %76 = vmatpush1.msra.mxu0 0.0
    %77 = vmatprep.subr.mxu0 0.0
    %78 = vmatpush1.msra.mxu0 0.0
    %79 = vmatprep.subr.mxu0 0.0
    %80 = vmatpush1.msra.mxu0 0.0
    %81 = vmatprep.subr.mxu0 0.0
    %82 = vmatpush1.msra.mxu0 0.0
    %83 = vmatprep.subr.mxu0 0.0
    %84 = vmatpush1.msra.mxu0 0.0
    %85 = vmatprep.subr.mxu0 0.0
    %86 = vmatpush1.msra.mxu0 0.0
    %87 = vmatprep.subr.mxu0 0.0
    %88 = vmatpush1.msra.mxu0 0.0
    %89 = vmatprep.subr.mxu0 0.0
    %90 = vmatpush1.msra.mxu0 0.0
    %91 = vmatprep.subr.mxu0 0.0
    %92 = vmatpush1.msra.mxu0 0.0
    %93 = vmatprep.subr.mxu0 0.0
    %94 = vmatpush1.msra.mxu0 0.0
    %95 = vmatprep.subr.mxu0 0.0
    %96 = vmatpush1.msra.mxu0 0.0
    %97 = vmatprep.subr.mxu0 0.0
    %98 = vmatpush1.msra.mxu0 0.0
    %99 = vmatprep.subr.mxu0 0.0
    %100 = vmatpush1.msra.mxu0 0.0
    %101 = vmatprep.subr.mxu0 0.0
    %102 = vmatpush1.msra.mxu0 0.0
    %103 = vmatprep.subr.mxu0 0.0
    %104 = vmatpush1.msra.mxu0 0.0
    %105 = vmatprep.subr.mxu0 0.0
    %106 = vmatpush1.msra.mxu0 0.0
    %107 = vmatprep.subr.mxu0 0.0
    %108 = vmatpush1.msra.mxu0 0.0
    %109 = vmatprep.subr.mxu0 0.0
    %110 = vmatpush1.msra.mxu0 0.0
    %111 = vmatprep.subr.mxu0 0.0
    %112 = vmatpush1.msra.mxu0 0.0
    %113 = vmatprep.subr.mxu0 0.0
    %114 = vmatpush1.msra.mxu0 0.0
    %115 = vmatprep.subr.mxu0 0.0
    %116 = vmatpush1.msra.mxu0 0.0
    %117 = vmatprep.subr.mxu0 0.0
    %118 = vmatpush1.msra.mxu0 0.0
    %119 = vmatprep.subr.mxu0 0.0
    %120 = vmatpush1.msra.mxu0 0.0
    %121 = vmatprep.subr.mxu0 0.0
    %122 = vmatpush1.msra.mxu0 0.0
    %123 = vmatprep.subr.mxu0 0.0
    %124 = vmatpush1.msra.mxu0 0.0
    %125 = vmatprep.subr.mxu0 0.0
    %126 = vmatpush1.msra.mxu0 0.0
    %127 = vmatprep.subr.mxu0 0.0
    %128 = vmatpush1.msra.mxu0 0.0
    %129 = vmatprep.mubr.f32.mxu0 0.0
    %130 = vmatmul.mubr.f32.gmra.mrb[0].mxu0 %v60
    %v131 = vpop.f32.mrb[0].mxu0
    %v132 = vadd.f32 0.0, %v131
    %v133 = vpop.f32.mrb[0].mxu0
    %v134 = vadd.f32 0.0, %v133
    %135 = vmatprep.mubr.f32.mxu0 0.0
    %136 = vmatmul.mubr.f32.gmra.mrb[0].mxu0 %v63
    %v137 = vpop.f32.mrb[0].mxu0
    %v138 = vadd.f32 0.0, %v137
    %v139 = vpop.f32.mrb[0].mxu0
    %v140 = vadd.f32 0.0, %v139
    %141 = vdwg.mxu0
    %vm142 = vcmp.ge.f32.partialorder %v132, 0.0
    %vm143 = vcmp.ge.f32.partialorder %v134, 0.0
    %vm144 = vcmp.ge.f32.partialorder %v138, 0.0
    %vm145 = vcmp.ge.f32.partialorder %v140, 0.0
    %v146 = vstv %s52
    %v147 = vmul.f32 %v146, %v132
    %v148 = vmul.f32 %v146, %v134
    %v149 = vmul.f32 %v146, %v138
    %v150 = vmul.f32 %v146, %v140
    %v151 = vsel %vm142, %v132, %v147
    %v152 = vsel %vm143, %v134, %v148
    %v153 = vsel %vm144, %v138, %v149
    %v154 = vsel %vm145, %v140, %v150
    %v155 = vmul.f32 %v151, %v151
    %v156 = vmul.f32 %v153, %v153
    %157 = vadd.xlane.f32.xlu0 %v151
    %v158 = vpop.xlane.xlu0 %157
    %159 = vadd.xlane.f32.xlu0 %v153
    %v160 = vpop.xlane.xlu0 %159
    %161 = vadd.xlane.f32.xlu0 %v155
    %v162 = vpop.xlane.xlu0 %161
    %163 = vadd.xlane.f32.xlu0 %v156
    %v164 = vpop.xlane.xlu0 %163
    %vm165 = vcmask 7168
    %v166 = vsel %vm165, %v158, 0.0
    %v167 = vsel %vm165, %v160, 0.0
    %v168 = vadd.f32 %v166, %v167
    %169 = vadd.xlane.f32.xlu0 %v168
    %v170 = vpop.xlane.xlu0 %169
    %v171 = vrot.slane %v170, 4
    %v172 = vadd.f32 %v170, %v171
    %v173 = vrot.slane %v172, 2
    %v174 = vadd.f32 %v172, %v173
    %v175 = vrot.slane %v174, 1
    %v176 = vadd.f32 %v174, %v175
    %s177 = vtos %v176
    %s178 = smul.f32 %s177, 0.00048828125
    %v179 = vsel %vm165, %v162, 0.0
    %v180 = vsel %vm165, %v164, 0.0
    %v181 = vadd.f32 %v179, %v180
    %182 = vadd.xlane.f32.xlu0 %v181
    %v183 = vpop.xlane.xlu0 %182
    %v184 = vrot.slane %v183, 4
    %v185 = vadd.f32 %v183, %v184
    %v186 = vrot.slane %v185, 2
    %v187 = vadd.f32 %v185, %v186
    %v188 = vrot.slane %v187, 1
    %v189 = vadd.f32 %v187, %v188
    %s190 = vtos %v189
    %s191 = smul.f32 %s190, 0.00048828125
    %s192 = smul.f32 %s178, %s178
    %s193 = ssub.f32 %s191, %s192
    %s194 = smax.f32 %s193, 0.0
    %s195 = sadd.f32 %s194, 1e-08
    %v196 = vstv %s195
    %v197 = vrsqrt.pop %v196
    %s198 = vtos %v197
    %v199 = vstv %s198
    %v200 = vmul.f32 %v54, %v199
    %v201 = vmul.f32 %v55, %v199
    %203 = vset.pattern.permute.xlu0 24
    %204 = vperm.xlu0 %203, %v200
    %v205 = vpop.permute.xlu0 %204
    %208 = vset.pattern.permute.xlu0 24
    %209 = vperm.xlu0 %208, %v201
    %v210 = vpop.permute.xlu0 %209
    %v212 = vmul.f32 %v151, %v205
    %v213 = vmul.f32 %v153, %v210
    %v214 = vstv %s178
    %v215 = vmul.f32 %v214, %v200
    %v216 = vmul.f32 %v214, %v201
    %219 = vrot.lane.b32.xlu0 %v215, 1
    %v220 = vpop.permute.xlu0 %219
    %221 = vrot.lane.b32.xlu0 %v216, 1
    %v222 = vpop.permute.xlu0 %221
    %v225 = vsub.f32 %v54, %v220
    %v226 = vsub.f32 %v55, %v222
    %228 = vset.pattern.permute.xlu0 25
    %229 = vperm.xlu0 %228, %v225
    %v230 = vpop.permute.xlu0 %229
    %233 = vset.pattern.permute.xlu0 25
    %234 = vperm.xlu0 %233, %v226
    %v235 = vpop.permute.xlu0 %234
    %v237 = vadd.f32 %v212, %v230
    %v238 = vadd.f32 %v213, %v235
    %v239 = vmul.f32 %v152, %v152
    %v240 = vmul.f32 %v154, %v154
    %241 = vadd.xlane.f32.xlu0 %v152
    %v242 = vpop.xlane.xlu0 %241
    %243 = vadd.xlane.f32.xlu0 %v154
    %v244 = vpop.xlane.xlu0 %243
    %245 = vadd.xlane.f32.xlu0 %v239
    %v246 = vpop.xlane.xlu0 %245
    %247 = vadd.xlane.f32.xlu0 %v240
    %v248 = vpop.xlane.xlu0 %247
    %v249 = vsel %vm165, %v242, 0.0
    %v250 = vsel %vm165, %v244, 0.0
    %v251 = vadd.f32 %v249, %v250
    %252 = vadd.xlane.f32.xlu0 %v251
    %v253 = vpop.xlane.xlu0 %252
    %v254 = vrot.slane %v253, 4
    %v255 = vadd.f32 %v253, %v254
    %v256 = vrot.slane %v255, 2
    %v257 = vadd.f32 %v255, %v256
    %v258 = vrot.slane %v257, 1
    %v259 = vadd.f32 %v257, %v258
    %s260 = vtos %v259
    %s261 = smul.f32 %s260, 0.00048828125
    %v262 = vsel %vm165, %v246, 0.0
    %v263 = vsel %vm165, %v248, 0.0
    %v264 = vadd.f32 %v262, %v263
    %265 = vadd.xlane.f32.xlu0 %v264
    %v266 = vpop.xlane.xlu0 %265
    %v267 = vrot.slane %v266, 4
    %v268 = vadd.f32 %v266, %v267
    %v269 = vrot.slane %v268, 2
    %v270 = vadd.f32 %v268, %v269
    %v271 = vrot.slane %v270, 1
    %v272 = vadd.f32 %v270, %v271
    %s273 = vtos %v272
    %s274 = smul.f32 %s273, 0.00048828125
    %s275 = smul.f32 %s261, %s261
    %s276 = ssub.f32 %s274, %s275
    %s277 = smax.f32 %s276, 0.0
    %s278 = sadd.f32 %s277, 1e-08
    %v279 = vstv %s278
    %v280 = vrsqrt.pop %v279
    %s281 = vtos %v280
    %v282 = vstv %s281
    %v283 = vmul.f32 %v54, %v282
    %v284 = vmul.f32 %v55, %v282
    %286 = vset.pattern.permute.xlu0 24
    %287 = vperm.xlu0 %286, %v283
    %v288 = vpop.permute.xlu0 %287
    %291 = vset.pattern.permute.xlu0 24
    %292 = vperm.xlu0 %291, %v284
    %v293 = vpop.permute.xlu0 %292
    %v295 = vmul.f32 %v152, %v288
    %v296 = vmul.f32 %v154, %v293
    %v297 = vstv %s261
    %v298 = vmul.f32 %v297, %v283
    %v299 = vmul.f32 %v297, %v284
    %302 = vrot.lane.b32.xlu0 %v298, 1
    %v303 = vpop.permute.xlu0 %302
    %304 = vrot.lane.b32.xlu0 %v299, 1
    %v305 = vpop.permute.xlu0 %304
    %v308 = vsub.f32 %v54, %v303
    %v309 = vsub.f32 %v55, %v305
    %311 = vset.pattern.permute.xlu0 25
    %312 = vperm.xlu0 %311, %v308
    %v313 = vpop.permute.xlu0 %312
    %316 = vset.pattern.permute.xlu0 25
    %317 = vperm.xlu0 %316, %v309
    %v318 = vpop.permute.xlu0 %317
    %v320 = vadd.f32 %v295, %v313
    %v321 = vadd.f32 %v296, %v318
    %v322 = vlaneseq
    %v323 = vand.u32 %v322, 127
    %324 = vrot.lane.b32.xlu0 %v237, 2
    %v325 = vpop.permute.xlu0 %324
    %326 = vrot.lane.b32.xlu0 %v238, 2
    %v327 = vpop.permute.xlu0 %326
    %328 = vrot.lane.b32.xlu0 %v320, 2
    %v329 = vpop.permute.xlu0 %328
    %330 = vrot.lane.b32.xlu0 %v321, 2
    %v331 = vpop.permute.xlu0 %330
    %vm332 = vcmp.lt.s32.totalorder %v323, 2
    %v333 = vsel %vm332, %v325, %v329
    %v334 = vsel %vm332, %v327, %v331
    %v335 = vsel %vm332, %v329, %v325
    %v336 = vsel %vm332, %v331, %v327
    %vm337 = vcmp.ge.s32.totalorder %v323, 2
    %v338 = vsel %vm337, 1, 0
    %v339 = vlaneseq
    %v340 = vshrl.u32 %v339, 7
    %v341 = vsub.s32 0, %v340
    %v342 = vrot.slane %v338, %v341
    %vm343 = vcmp.eq.s32.totalorder %v342, 1
    %v344 = vsel %vm343, %v335, 0.0
    %v345 = vsel %vm343, %v333, 0.0
    %v346 = vsel %vm343, %v336, 0.0
    %v347 = vsel %vm343, %v334, 0.0
    %348 = vset.pattern.permute.xlu0 28
    %349 = vperm.xlu0 %348, %v54
    %v350 = vpop.permute.xlu0 %349
    %352 = vset.pattern.permute.xlu0 28
    %353 = vperm.xlu0 %352, %v55
    %v354 = vpop.permute.xlu0 %353
    %v356 = vmul.f32 %v350, %v344
    %v357 = vmul.f32 %v350, %v345
    %v358 = vmul.f32 %v354, %v346
    %v359 = vmul.f32 %v354, %v347
    %360 = vset.pattern.permute.xlu0 29
    %361 = vperm.xlu0 %360, %v54
    %v362 = vpop.permute.xlu0 %361
    %364 = vset.pattern.permute.xlu0 29
    %365 = vperm.xlu0 %364, %v55
    %v366 = vpop.permute.xlu0 %365
    %v368 = vmul.f32 %v362, %v237
    %v369 = vmul.f32 %v362, %v320
    %v370 = vmul.f32 %v366, %v238
    %v371 = vmul.f32 %v366, %v321
    %v372 = vadd.f32 %v356, %v368
    %v373 = vadd.f32 %v357, %v369
    %v374 = vadd.f32 %v358, %v370
    %v375 = vadd.f32 %v359, %v371
    %376 = vrot.lane.b32.xlu0 %v237, 126
    %v377 = vpop.permute.xlu0 %376
    %378 = vrot.lane.b32.xlu0 %v238, 126
    %v379 = vpop.permute.xlu0 %378
    %380 = vrot.lane.b32.xlu0 %v320, 126
    %v381 = vpop.permute.xlu0 %380
    %382 = vrot.lane.b32.xlu0 %v321, 126
    %v383 = vpop.permute.xlu0 %382
    %vm384 = vcmp.lt.s32.totalorder %v323, 126
    %v385 = vsel %vm384, %v377, %v381
    %v386 = vsel %vm384, %v379, %v383
    %v387 = vsel %vm384, %v381, %v377
    %v388 = vsel %vm384, %v383, %v379
    %v389 = vsel %vm384, 1, 0
    %v390 = vlaneseq
    %v391 = vshrl.u32 %v390, 7
    %v392 = vsub.s32 0, %v391
    %v393 = vrot.slane %v389, %v392
    %vm394 = vcmp.eq.s32.totalorder %v393, 1
    %v395 = vsel %vm394, %v385, 0.0
    %v396 = vsel %vm394, %v387, 0.0
    %v397 = vsel %vm394, %v386, 0.0
    %v398 = vsel %vm394, %v388, 0.0
    %399 = vset.pattern.permute.xlu0 30
    %400 = vperm.xlu0 %399, %v54
    %v401 = vpop.permute.xlu0 %400
    %403 = vset.pattern.permute.xlu0 30
    %404 = vperm.xlu0 %403, %v55
    %v405 = vpop.permute.xlu0 %404
    %v407 = vmul.f32 %v401, %v395
    %v408 = vmul.f32 %v401, %v396
    %v409 = vmul.f32 %v405, %v397
    %v410 = vmul.f32 %v405, %v398
    %v411 = vadd.f32 %v372, %v407
    %v412 = vadd.f32 %v373, %v408
    %v413 = vadd.f32 %v374, %v409
    %v414 = vadd.f32 %v375, %v410
    %vm415 = vcmp.ge.f32.partialorder %v411, 0.0
    %vm416 = vcmp.ge.f32.partialorder %v412, 0.0
    %vm417 = vcmp.ge.f32.partialorder %v413, 0.0
    %vm418 = vcmp.ge.f32.partialorder %v414, 0.0
    %v419 = vstv %s53
    %v420 = vmul.f32 %v419, %v411
    %v421 = vmul.f32 %v419, %v412
    %v422 = vmul.f32 %v419, %v413
    %v423 = vmul.f32 %v419, %v414
    %v424 = vsel %vm415, %v411, %v420
    %v425 = vsel %vm416, %v412, %v421
    %v426 = vsel %vm417, %v413, %v422
    %v427 = vsel %vm418, %v414, %v423
    %v428 = vmul.f32 %v424, %v424
    %v429 = vmul.f32 %v426, %v426
    %430 = vadd.xlane.f32.xlu0 %v424
    %v431 = vpop.xlane.xlu0 %430
    %432 = vadd.xlane.f32.xlu0 %v426
    %v433 = vpop.xlane.xlu0 %432
    %434 = vadd.xlane.f32.xlu0 %v428
    %v435 = vpop.xlane.xlu0 %434
    %436 = vadd.xlane.f32.xlu0 %v429
    %v437 = vpop.xlane.xlu0 %436
    %v438 = vsel %vm165, %v431, 0.0
    %v439 = vsel %vm165, %v433, 0.0
    %v440 = vadd.f32 %v438, %v439
    %441 = vadd.xlane.f32.xlu0 %v440
    %v442 = vpop.xlane.xlu0 %441
    %v443 = vrot.slane %v442, 4
    %v444 = vadd.f32 %v442, %v443
    %v445 = vrot.slane %v444, 2
    %v446 = vadd.f32 %v444, %v445
    %v447 = vrot.slane %v446, 1
    %v448 = vadd.f32 %v446, %v447
    %s449 = vtos %v448
    %s450 = smul.f32 %s449, 0.00048828125
    %v451 = vsel %vm165, %v435, 0.0
    %v452 = vsel %vm165, %v437, 0.0
    %v453 = vadd.f32 %v451, %v452
    %454 = vadd.xlane.f32.xlu0 %v453
    %v455 = vpop.xlane.xlu0 %454
    %v456 = vrot.slane %v455, 4
    %v457 = vadd.f32 %v455, %v456
    %v458 = vrot.slane %v457, 2
    %v459 = vadd.f32 %v457, %v458
    %v460 = vrot.slane %v459, 1
    %v461 = vadd.f32 %v459, %v460
    %s462 = vtos %v461
    %s463 = smul.f32 %s462, 0.00048828125
    %s464 = smul.f32 %s450, %s450
    %s465 = ssub.f32 %s463, %s464
    %s466 = smax.f32 %s465, 0.0
    %s467 = sadd.f32 %s466, 1e-08
    %v468 = vstv %s467
    %v469 = vrsqrt.pop %v468
    %s470 = vtos %v469
    %v471 = vstv %s470
    %v472 = vmul.f32 %v54, %v471
    %v473 = vmul.f32 %v55, %v471
    %475 = vset.pattern.permute.xlu0 26
    %476 = vperm.xlu0 %475, %v472
    %v477 = vpop.permute.xlu0 %476
    %480 = vset.pattern.permute.xlu0 26
    %481 = vperm.xlu0 %480, %v473
    %v482 = vpop.permute.xlu0 %481
    %v484 = vmul.f32 %v424, %v477
    %v485 = vmul.f32 %v426, %v482
    %v486 = vstv %s450
    %v487 = vmul.f32 %v486, %v472
    %v488 = vmul.f32 %v486, %v473
    %491 = vrot.lane.b32.xlu0 %v487, 1
    %v492 = vpop.permute.xlu0 %491
    %493 = vrot.lane.b32.xlu0 %v488, 1
    %v494 = vpop.permute.xlu0 %493
    %v497 = vsub.f32 %v54, %v492
    %v498 = vsub.f32 %v55, %v494
    %500 = vset.pattern.permute.xlu0 27
    %501 = vperm.xlu0 %500, %v497
    %v502 = vpop.permute.xlu0 %501
    %505 = vset.pattern.permute.xlu0 27
    %506 = vperm.xlu0 %505, %v498
    %v507 = vpop.permute.xlu0 %506
    %v509 = vadd.f32 %v484, %v502
    %v510 = vadd.f32 %v485, %v507
    %v511 = vmul.f32 %v425, %v425
    %v512 = vmul.f32 %v427, %v427
    %513 = vadd.xlane.f32.xlu0 %v425
    %v514 = vpop.xlane.xlu0 %513
    %515 = vadd.xlane.f32.xlu0 %v427
    %v516 = vpop.xlane.xlu0 %515
    %517 = vadd.xlane.f32.xlu0 %v511
    %v518 = vpop.xlane.xlu0 %517
    %519 = vadd.xlane.f32.xlu0 %v512
    %v520 = vpop.xlane.xlu0 %519
    %v521 = vsel %vm165, %v514, 0.0
    %v522 = vsel %vm165, %v516, 0.0
    %v523 = vadd.f32 %v521, %v522
    %524 = vadd.xlane.f32.xlu0 %v523
    %v525 = vpop.xlane.xlu0 %524
    %v526 = vrot.slane %v525, 4
    %v527 = vadd.f32 %v525, %v526
    %v528 = vrot.slane %v527, 2
    %v529 = vadd.f32 %v527, %v528
    %v530 = vrot.slane %v529, 1
    %v531 = vadd.f32 %v529, %v530
    %s532 = vtos %v531
    %s533 = smul.f32 %s532, 0.00048828125
    %v534 = vsel %vm165, %v518, 0.0
    %v535 = vsel %vm165, %v520, 0.0
    %v536 = vadd.f32 %v534, %v535
    %537 = vadd.xlane.f32.xlu0 %v536
    %v538 = vpop.xlane.xlu0 %537
    %v539 = vrot.slane %v538, 4
    %v540 = vadd.f32 %v538, %v539
    %v541 = vrot.slane %v540, 2
    %v542 = vadd.f32 %v540, %v541
    %v543 = vrot.slane %v542, 1
    %v544 = vadd.f32 %v542, %v543
    %s545 = vtos %v544
    %s546 = smul.f32 %s545, 0.00048828125
    %s547 = smul.f32 %s533, %s533
    %s548 = ssub.f32 %s546, %s547
    %s549 = smax.f32 %s548, 0.0
    %s550 = sadd.f32 %s549, 1e-08
    %v551 = vstv %s550
    %v552 = vrsqrt.pop %v551
    %s553 = vtos %v552
    %v554 = vstv %s553
    %v555 = vmul.f32 %v54, %v554
    %v556 = vmul.f32 %v55, %v554
    %558 = vset.pattern.permute.xlu0 26
    %559 = vperm.xlu0 %558, %v555
    %v560 = vpop.permute.xlu0 %559
    %563 = vset.pattern.permute.xlu0 26
    %564 = vperm.xlu0 %563, %v556
    %v565 = vpop.permute.xlu0 %564
    %v567 = vmul.f32 %v425, %v560
    %v568 = vmul.f32 %v427, %v565
    %v569 = vstv %s533
    %v570 = vmul.f32 %v569, %v555
    %v571 = vmul.f32 %v569, %v556
    %574 = vrot.lane.b32.xlu0 %v570, 1
    %v575 = vpop.permute.xlu0 %574
    %576 = vrot.lane.b32.xlu0 %v571, 1
    %v577 = vpop.permute.xlu0 %576
    %v580 = vsub.f32 %v54, %v575
    %v581 = vsub.f32 %v55, %v577
    %583 = vset.pattern.permute.xlu0 27
    %584 = vperm.xlu0 %583, %v580
    %v585 = vpop.permute.xlu0 %584
    %588 = vset.pattern.permute.xlu0 27
    %589 = vperm.xlu0 %588, %v581
    %v590 = vpop.permute.xlu0 %589
    %v592 = vadd.f32 %v567, %v585
    %v593 = vadd.f32 %v568, %v590
    %594 = vrot.lane.b32.xlu0 %v54, 120
    %v595 = vpop.permute.xlu0 %594
    %vm596 = vcmask 130048
    %v597 = vsel %vm596, %v595, 0
    %599 = vmatprep.subr.mxu0 %v592
    %600 = vmatpush1.msra.mxu0 %v509
    %601 = vmatprep.subr.mxu0 %v593
    %602 = vmatpush1.msra.mxu0 %v510
    %603 = vmatprep.subr.mxu0 0.0
    %604 = vmatpush1.msra.mxu0 0.0
    %605 = vmatprep.subr.mxu0 0.0
    %606 = vmatpush1.msra.mxu0 0.0
    %607 = vmatprep.subr.mxu0 0.0
    %608 = vmatpush1.msra.mxu0 0.0
    %609 = vmatprep.subr.mxu0 0.0
    %610 = vmatpush1.msra.mxu0 0.0
    %611 = vmatprep.subr.mxu0 0.0
    %612 = vmatpush1.msra.mxu0 0.0
    %613 = vmatprep.subr.mxu0 0.0
    %614 = vmatpush1.msra.mxu0 0.0
    %615 = vmatprep.subr.mxu0 0.0
    %616 = vmatpush1.msra.mxu0 0.0
    %617 = vmatprep.subr.mxu0 0.0
    %618 = vmatpush1.msra.mxu0 0.0
    %619 = vmatprep.subr.mxu0 0.0
    %620 = vmatpush1.msra.mxu0 0.0
    %621 = vmatprep.subr.mxu0 0.0
    %622 = vmatpush1.msra.mxu0 0.0
    %623 = vmatprep.subr.mxu0 0.0
    %624 = vmatpush1.msra.mxu0 0.0
    %625 = vmatprep.subr.mxu0 0.0
    %626 = vmatpush1.msra.mxu0 0.0
    %627 = vmatprep.subr.mxu0 0.0
    %628 = vmatpush1.msra.mxu0 0.0
    %629 = vmatprep.subr.mxu0 0.0
    %630 = vmatpush1.msra.mxu0 0.0
    %631 = vmatprep.subr.mxu0 0.0
    %632 = vmatpush1.msra.mxu0 0.0
    %633 = vmatprep.subr.mxu0 0.0
    %634 = vmatpush1.msra.mxu0 0.0
    %635 = vmatprep.subr.mxu0 0.0
    %636 = vmatpush1.msra.mxu0 0.0
    %637 = vmatprep.subr.mxu0 0.0
    %638 = vmatpush1.msra.mxu0 0.0
    %639 = vmatprep.subr.mxu0 0.0
    %640 = vmatpush1.msra.mxu0 0.0
    %641 = vmatprep.subr.mxu0 0.0
    %642 = vmatpush1.msra.mxu0 0.0
    %643 = vmatprep.subr.mxu0 0.0
    %644 = vmatpush1.msra.mxu0 0.0
    %645 = vmatprep.subr.mxu0 0.0
    %646 = vmatpush1.msra.mxu0 0.0
    %647 = vmatprep.subr.mxu0 0.0
    %648 = vmatpush1.msra.mxu0 0.0
    %649 = vmatprep.subr.mxu0 0.0
    %650 = vmatpush1.msra.mxu0 0.0
    %651 = vmatprep.subr.mxu0 0.0
    %652 = vmatpush1.msra.mxu0 0.0
    %653 = vmatprep.subr.mxu0 0.0
    %654 = vmatpush1.msra.mxu0 0.0
    %655 = vmatprep.subr.mxu0 0.0
    %656 = vmatpush1.msra.mxu0 0.0
    %657 = vmatprep.subr.mxu0 0.0
    %658 = vmatpush1.msra.mxu0 0.0
    %659 = vmatprep.subr.mxu0 0.0
    %660 = vmatpush1.msra.mxu0 0.0
    %661 = vmatprep.subr.mxu0 0.0
    %662 = vmatpush1.msra.mxu0 0.0
    %663 = vmatprep.mubr.f32.mxu0 0.0
    %664 = vmatmul.mubr.f32.gmra.mrb[0].mxu0 %v597
    %v665 = vpop.f32.mrb[0].mxu0
    %v666 = vadd.f32 %v56, %v665
    %v667 = vpop.f32.mrb[0].mxu0
    %v668 = vadd.f32 %v57, %v667
    %669 = vdwg.mxu0
    %670 = vst [vmem:[#allocation9] sm:$0xff] %v666
    %671 = vst [vmem:[#allocation9 + $0x8] sm:$0xff] %v668
    // Predicated region
    $region26: #{tpu_custom_call.1} parent=1 // pred_check
      _
    $region27: #{tpu_custom_call.1} parent=1 // pred_check_branch
      %673 = sbr.rel (0) target = $region29
    $region28: #{tpu_custom_call.1} parent=1 // pred_region
      %s675 = ssub.s32 256, 256
      %676 = vsyncadd [#allocation4], %s675
      %s678 = sshll.u32 [#allocation9], 4
      %s679 = int_to_ptr.vmem [resolvable:$true] %s678
      %681 = dma.vmem_to_hbm [thread:$0]  %s679, 256, %s3, [#allocation4]
    $region29: #{tpu_custom_call.1} parent=1 // pred_fallthru
      _
    // Predicated region
    $region30: #{tpu_custom_call.1} parent=1 // pred_check
      _
    $region31: #{tpu_custom_call.1} parent=1 // pred_check_branch
      %683 = sbr.rel (0) target = $region33
    $region32: #{tpu_custom_call.1} parent=1 // pred_region
      %684 = dma.done [#allocation4], 256
    $region33: #{tpu_custom_call.1} parent=1 // pred_fallthru
      _
    %685 = vsyncpa [#allocation3], 1
    %686 = vsyncpa [#allocation8], 1
    %687 = vsyncpa [#allocation4], 1
    %688 = vsyncpa [#allocation5], 1

</llo_original>
